<compile_context>
chip_gen: v7x
topology: tpu7x:2x2x1
jax: 0.10.0
libtpu: 0.0.40
codegen_flags: <defaults>
</compile_context>

<pallas_src>
import numpy as np
import jax
import jax.numpy as jnp
from jax import lax
from jax.experimental import pallas as pl
from jax.experimental.pallas import tpu as pltpu

# ---- model hyper-parameters (small, consistent with the module defaults) ----
PREFIX_LENGTH = 2                      # prefix_length
PREFIX_SIZE = 128                      # prefix_size (512 in torch; small here)
EMBED = 128                            # gpt_embedding_size
H1 = EMBED * PREFIX_LENGTH // 2        # 128
H2 = EMBED * PREFIX_LENGTH             # 256
VOCAB = 256                            # synthetic vocab for wte
BATCH = 2
SEQ = 16


def _vqamed_kernel(qlen_ref, tok_ref, prefix_ref,
                   w1_ref, b1_ref, w2_ref, b2_ref, w3_ref, b3_ref,
                   wte_ref, out_ref):
    B, S, E = out_ref.shape
    P = PREFIX_LENGTH

    # ------------- clip_project MLP, whole batch at once (MXU + EUP tanh) -----------
    x = prefix_ref[...]                                                   # (B, prefix_size)
    h = jnp.tanh(jnp.dot(x, w1_ref[...],
                         preferred_element_type=jnp.float32) + b1_ref[...])
    h = jnp.tanh(jnp.dot(h, w2_ref[...],
                         preferred_element_type=jnp.float32) + b2_ref[...])
    proj = jnp.dot(h, w3_ref[...],
                   preferred_element_type=jnp.float32) + b3_ref[...]      # (B, P*E)

    row_ids = lax.broadcasted_iota(jnp.int32, (S, 1), 0)                  # (S, 1)

    for b in range(B):                       # static unroll; one grid step for the batch
        # ---------- token embedding: direct wte row gather (SMEM ids -> VMEM rows) ----
        # Each read is a (1, E) dynamic slice; no one-hot tensor, no MXU pass.
        rows = [wte_ref[pl.ds(tok_ref[b, s], 1), :] for s in range(S)]
        emb_b = jnp.concatenate(rows, axis=0)                             # (S, E)

        # ---------- scatter prefix rows at q_len[b], in-register -----------------------
        # P masked selects (tiny at P=2); rows with q+p >= S are silently dropped, which
        # matches "callers must guarantee q_len + P <= S" (torch errors on that case).
        q = qlen_ref[b]
        for p in range(P):
            pref_row = proj[b:b + 1, p * E:(p + 1) * E]                   # (1, E), lane-aligned
            emb_b = jnp.where(row_ids == q + p, pref_row, emb_b)

        # One unmasked, lane-dense (S, E) store per example.
        out_ref[b, :, :] = emb_b.astype(out_ref.dtype)


def _pallas_embedding(q_len, tokens, prefix, params):
    w1, b1, w2, b2, w3, b3, wte = params
    B, S = tokens.shape

    def full_spec(shape):
        nd = len(shape)
        return pl.BlockSpec(shape, lambda i, *_, _nd=nd: (0,) * _nd)

    grid_spec = pltpu.PrefetchScalarGridSpec(
        num_scalar_prefetch=2,               # q_len, tokens -> SMEM scalars
        grid=(1,),                           # whole batch in one step (no per-example grid)
        in_specs=[
            full_spec(prefix.shape),         # (B, prefix_size)
            full_spec(w1.shape), full_spec(b1.shape),
            full_spec(w2.shape), full_spec(b2.shape),
            full_spec(w3.shape), full_spec(b3.shape),
            full_spec(wte.shape),            # toy V=256 table fits VMEM; see TODO for prod
        ],
        out_specs=pl.BlockSpec((B, S, EMBED), lambda i, *_: (0, 0, 0)),
    )

    return pl.pallas_call(
        _vqamed_kernel,
        out_shape=jax.ShapeDtypeStruct((B, S, EMBED), jnp.float32),
        grid_spec=grid_spec,
        compiler_params=pltpu.CompilerParams(
            dimension_semantics=("arbitrary",)),
    )(q_len, tokens, prefix, w1, b1, w2, b2, w3, b3, wte)


@jax.jit
def vqamed_forward(prefix, labels, tokens, mask, q_len, params):
    """Mirrors VQAmedModel.forward: builds inputs_embeds; labels unused there."""
    del labels
    inputs_embeds = _pallas_embedding(q_len, tokens, prefix, params)
    # TODO(synk): self.gpt(inputs_embeds=..., attention_mask=mask) — pretrained
    # causal LM (+LoRA) forward is not reproducible here.
    return inputs_embeds, mask


def init_params(key):
    ks = jax.random.split(key, 7)

    def lin(k, fan_in, fan_out):
        return jax.random.normal(k, (fan_in, fan_out), jnp.float32) / np.sqrt(fan_in)

    w1 = lin(ks[0], PREFIX_SIZE, H1); b1 = 0.01 * jax.random.normal(ks[1], (1, H1), jnp.float32)
    w2 = lin(ks[2], H1, H2);          b2 = 0.01 * jax.random.normal(ks[3], (1, H2), jnp.float32)
    w3 = lin(ks[4], H2, H2);          b3 = 0.01 * jax.random.normal(ks[5], (1, H2), jnp.float32)
    wte = 0.02 * jax.random.normal(ks[6], (VOCAB, EMBED), jnp.float32)
    return (w1, b1, w2, b2, w3, b3, wte)


def reference_embedding(prefix, tokens, q_len_np, params):
    w1, b1, w2, b2, w3, b3, wte = params
    h = jnp.tanh(prefix @ w1 + b1)
    h = jnp.tanh(h @ w2 + b2)
    proj = (h @ w3 + b3).reshape(BATCH, PREFIX_LENGTH, EMBED)
    emb = wte[tokens]
    for b in range(BATCH):
        s = int(q_len_np[b])
        emb = emb.at[b, s:s + PREFIX_LENGTH].set(proj[b])
    return emb


if __name__ == "__main__":
    key = jax.random.PRNGKey(0)
    k_par, k_pref, k_tok = jax.random.split(key, 3)

    params = init_params(k_par)
    prefix = jax.random.normal(k_pref, (BATCH, PREFIX_SIZE), jnp.float32)
    tokens = jax.random.randint(k_tok, (BATCH, SEQ), 0, VOCAB, dtype=jnp.int32)
    labels = tokens                                   # unused by forward
    mask = jnp.ones((BATCH, SEQ), jnp.float32)
    q_len_np = np.array([3, 7], dtype=np.int32)       # q_len[b] + prefix_length <= SEQ
    q_len = jnp.asarray(q_len_np)

    inputs_embeds, out_mask = vqamed_forward(prefix, labels, tokens, mask, q_len, params)
    inputs_embeds = jax.block_until_ready(inputs_embeds)

    ref = reference_embedding(prefix, tokens, q_len_np, params)
    np.testing.assert_allclose(np.asarray(inputs_embeds), np.asarray(ref),
                               rtol=1e-4, atol=1e-4)
    print("KERNEL_OK")
</pallas_src>

<mosaic_0001>
module attributes {stable_mosaic.version = 11 : i64} {
  func.func @_vqamed_kernel(%arg0: i32, %arg1: memref<2xi32, #tpu.memory_space<smem>>, %arg2: memref<2x16xi32, #tpu.memory_space<smem>>, %arg3: memref<2x128xf32, #tpu.memory_space<vmem>>, %arg4: memref<128x128xf32, #tpu.memory_space<vmem>>, %arg5: memref<1x128xf32, #tpu.memory_space<vmem>>, %arg6: memref<128x256xf32, #tpu.memory_space<vmem>>, %arg7: memref<1x256xf32, #tpu.memory_space<vmem>>, %arg8: memref<256x256xf32, #tpu.memory_space<vmem>>, %arg9: memref<1x256xf32, #tpu.memory_space<vmem>>, %arg10: memref<256x128xf32, #tpu.memory_space<vmem>>, %arg11: memref<2x16x128xf32, #tpu.memory_space<vmem>>) attributes {dimension_semantics = [#tpu.dimension_semantics<arbitrary>], iteration_bounds = array<i64: 1>, scalar_prefetch = 2 : i64, scratch_operands = 0 : i64, tpu.core_type = #tpu.core_type<tc>, window_params = [{pipeline_mode = #tpu.pipeline_mode<synchronous>, transform_indices = @transform_0, window_bounds = array<i64: 2, 128>}, {pipeline_mode = #tpu.pipeline_mode<synchronous>, transform_indices = @transform_1, window_bounds = array<i64: 128, 128>}, {pipeline_mode = #tpu.pipeline_mode<synchronous>, transform_indices = @transform_2, window_bounds = array<i64: 1, 128>}, {pipeline_mode = #tpu.pipeline_mode<synchronous>, transform_indices = @transform_3, window_bounds = array<i64: 128, 256>}, {pipeline_mode = #tpu.pipeline_mode<synchronous>, transform_indices = @transform_4, window_bounds = array<i64: 1, 256>}, {pipeline_mode = #tpu.pipeline_mode<synchronous>, transform_indices = @transform_5, window_bounds = array<i64: 256, 256>}, {pipeline_mode = #tpu.pipeline_mode<synchronous>, transform_indices = @transform_6, window_bounds = array<i64: 1, 256>}, {pipeline_mode = #tpu.pipeline_mode<synchronous>, transform_indices = @transform_7, window_bounds = array<i64: 256, 128>}, {pipeline_mode = #tpu.pipeline_mode<synchronous>, transform_indices = @transform_8, window_bounds = array<i64: 2, 16, 128>}]} {
    %c0 = arith.constant 0 : index
    %c0_0 = arith.constant 0 : index
    %0 = vector.load %arg3[%c0, %c0_0] : memref<2x128xf32, #tpu.memory_space<vmem>>, vector<2x128xf32>
    %c0_1 = arith.constant 0 : index
    %c0_2 = arith.constant 0 : index
    %1 = vector.load %arg4[%c0_1, %c0_2] : memref<128x128xf32, #tpu.memory_space<vmem>>, vector<128x128xf32>
    %cst = arith.constant dense<0.000000e+00> : vector<2x128xf32>
    %2 = tpu.matmul %0, %1, %cst {dimension_numbers = #tpu.dot_dimension_numbers<[1], [0], [0], [1], [0, 0, 1, 1], [], []>} : vector<2x128xf32>, vector<128x128xf32>, vector<2x128xf32> -> vector<2x128xf32>
    %c0_3 = arith.constant 0 : index
    %c0_4 = arith.constant 0 : index
    %3 = vector.load %arg5[%c0_3, %c0_4] : memref<1x128xf32, #tpu.memory_space<vmem>>, vector<1x128xf32>
    %4 = vector.broadcast %3 : vector<1x128xf32> to vector<2x128xf32>
    %5 = arith.addf %2, %4 : vector<2x128xf32>
    %6 = math.tanh %5 : vector<2x128xf32>
    %c0_5 = arith.constant 0 : index
    %c0_6 = arith.constant 0 : index
    %7 = vector.load %arg6[%c0_5, %c0_6] : memref<128x256xf32, #tpu.memory_space<vmem>>, vector<128x256xf32>
    %cst_7 = arith.constant dense<0.000000e+00> : vector<2x256xf32>
    %8 = tpu.matmul %6, %7, %cst_7 {dimension_numbers = #tpu.dot_dimension_numbers<[1], [0], [0], [1], [0, 0, 1, 1], [], []>} : vector<2x128xf32>, vector<128x256xf32>, vector<2x256xf32> -> vector<2x256xf32>
    %c0_8 = arith.constant 0 : index
    %c0_9 = arith.constant 0 : index
    %9 = vector.load %arg7[%c0_8, %c0_9] : memref<1x256xf32, #tpu.memory_space<vmem>>, vector<1x256xf32>
    %10 = vector.broadcast %9 : vector<1x256xf32> to vector<2x256xf32>
    %11 = arith.addf %8, %10 : vector<2x256xf32>
    %12 = math.tanh %11 : vector<2x256xf32>
    %c0_10 = arith.constant 0 : index
    %c0_11 = arith.constant 0 : index
    %13 = vector.load %arg8[%c0_10, %c0_11] : memref<256x256xf32, #tpu.memory_space<vmem>>, vector<256x256xf32>
    %cst_12 = arith.constant dense<0.000000e+00> : vector<2x256xf32>
    %14 = tpu.matmul %12, %13, %cst_12 {dimension_numbers = #tpu.dot_dimension_numbers<[1], [0], [0], [1], [0, 0, 1, 1], [], []>} : vector<2x256xf32>, vector<256x256xf32>, vector<2x256xf32> -> vector<2x256xf32>
    %c0_13 = arith.constant 0 : index
    %c0_14 = arith.constant 0 : index
    %15 = vector.load %arg9[%c0_13, %c0_14] : memref<1x256xf32, #tpu.memory_space<vmem>>, vector<1x256xf32>
    %16 = vector.broadcast %15 : vector<1x256xf32> to vector<2x256xf32>
    %17 = arith.addf %14, %16 : vector<2x256xf32>
    %18 = tpu.iota {dimensions = array<i32: 0>} : vector<16x1xi32>
    %c0_15 = arith.constant 0 : index
    %c0_16 = arith.constant 0 : index
    %19 = memref.load %arg2[%c0_15, %c0_16] : memref<2x16xi32, #tpu.memory_space<smem>>
    %20 = arith.index_cast %19 : i32 to index
    %c0_17 = arith.constant 0 : index
    %21 = vector.load %arg10[%20, %c0_17] : memref<256x128xf32, #tpu.memory_space<vmem>>, vector<1x128xf32>
    %c0_18 = arith.constant 0 : index
    %c1 = arith.constant 1 : index
    %22 = memref.load %arg2[%c0_18, %c1] : memref<2x16xi32, #tpu.memory_space<smem>>
    %23 = arith.index_cast %22 : i32 to index
    %c0_19 = arith.constant 0 : index
    %24 = vector.load %arg10[%23, %c0_19] : memref<256x128xf32, #tpu.memory_space<vmem>>, vector<1x128xf32>
    %c0_20 = arith.constant 0 : index
    %c2 = arith.constant 2 : index
    %25 = memref.load %arg2[%c0_20, %c2] : memref<2x16xi32, #tpu.memory_space<smem>>
    %26 = arith.index_cast %25 : i32 to index
    %c0_21 = arith.constant 0 : index
    %27 = vector.load %arg10[%26, %c0_21] : memref<256x128xf32, #tpu.memory_space<vmem>>, vector<1x128xf32>
    %c0_22 = arith.constant 0 : index
    %c3 = arith.constant 3 : index
    %28 = memref.load %arg2[%c0_22, %c3] : memref<2x16xi32, #tpu.memory_space<smem>>
    %29 = arith.index_cast %28 : i32 to index
    %c0_23 = arith.constant 0 : index
    %30 = vector.load %arg10[%29, %c0_23] : memref<256x128xf32, #tpu.memory_space<vmem>>, vector<1x128xf32>
    %c0_24 = arith.constant 0 : index
    %c4 = arith.constant 4 : index
    %31 = memref.load %arg2[%c0_24, %c4] : memref<2x16xi32, #tpu.memory_space<smem>>
    %32 = arith.index_cast %31 : i32 to index
    %c0_25 = arith.constant 0 : index
    %33 = vector.load %arg10[%32, %c0_25] : memref<256x128xf32, #tpu.memory_space<vmem>>, vector<1x128xf32>
    %c0_26 = arith.constant 0 : index
    %c5 = arith.constant 5 : index
    %34 = memref.load %arg2[%c0_26, %c5] : memref<2x16xi32, #tpu.memory_space<smem>>
    %35 = arith.index_cast %34 : i32 to index
    %c0_27 = arith.constant 0 : index
    %36 = vector.load %arg10[%35, %c0_27] : memref<256x128xf32, #tpu.memory_space<vmem>>, vector<1x128xf32>
    %c0_28 = arith.constant 0 : index
    %c6 = arith.constant 6 : index
    %37 = memref.load %arg2[%c0_28, %c6] : memref<2x16xi32, #tpu.memory_space<smem>>
    %38 = arith.index_cast %37 : i32 to index
    %c0_29 = arith.constant 0 : index
    %39 = vector.load %arg10[%38, %c0_29] : memref<256x128xf32, #tpu.memory_space<vmem>>, vector<1x128xf32>
    %c0_30 = arith.constant 0 : index
    %c7 = arith.constant 7 : index
    %40 = memref.load %arg2[%c0_30, %c7] : memref<2x16xi32, #tpu.memory_space<smem>>
    %41 = arith.index_cast %40 : i32 to index
    %c0_31 = arith.constant 0 : index
    %42 = vector.load %arg10[%41, %c0_31] : memref<256x128xf32, #tpu.memory_space<vmem>>, vector<1x128xf32>
    %c0_32 = arith.constant 0 : index
    %c8 = arith.constant 8 : index
    %43 = memref.load %arg2[%c0_32, %c8] : memref<2x16xi32, #tpu.memory_space<smem>>
    %44 = arith.index_cast %43 : i32 to index
    %c0_33 = arith.constant 0 : index
    %45 = vector.load %arg10[%44, %c0_33] : memref<256x128xf32, #tpu.memory_space<vmem>>, vector<1x128xf32>
    %c0_34 = arith.constant 0 : index
    %c9 = arith.constant 9 : index
    %46 = memref.load %arg2[%c0_34, %c9] : memref<2x16xi32, #tpu.memory_space<smem>>
    %47 = arith.index_cast %46 : i32 to index
    %c0_35 = arith.constant 0 : index
    %48 = vector.load %arg10[%47, %c0_35] : memref<256x128xf32, #tpu.memory_space<vmem>>, vector<1x128xf32>
    %c0_36 = arith.constant 0 : index
    %c10 = arith.constant 10 : index
    %49 = memref.load %arg2[%c0_36, %c10] : memref<2x16xi32, #tpu.memory_space<smem>>
    %50 = arith.index_cast %49 : i32 to index
    %c0_37 = arith.constant 0 : index
    %51 = vector.load %arg10[%50, %c0_37] : memref<256x128xf32, #tpu.memory_space<vmem>>, vector<1x128xf32>
    %c0_38 = arith.constant 0 : index
    %c11 = arith.constant 11 : index
    %52 = memref.load %arg2[%c0_38, %c11] : memref<2x16xi32, #tpu.memory_space<smem>>
    %53 = arith.index_cast %52 : i32 to index
    %c0_39 = arith.constant 0 : index
    %54 = vector.load %arg10[%53, %c0_39] : memref<256x128xf32, #tpu.memory_space<vmem>>, vector<1x128xf32>
    %c0_40 = arith.constant 0 : index
    %c12 = arith.constant 12 : index
    %55 = memref.load %arg2[%c0_40, %c12] : memref<2x16xi32, #tpu.memory_space<smem>>
    %56 = arith.index_cast %55 : i32 to index
    %c0_41 = arith.constant 0 : index
    %57 = vector.load %arg10[%56, %c0_41] : memref<256x128xf32, #tpu.memory_space<vmem>>, vector<1x128xf32>
    %c0_42 = arith.constant 0 : index
    %c13 = arith.constant 13 : index
    %58 = memref.load %arg2[%c0_42, %c13] : memref<2x16xi32, #tpu.memory_space<smem>>
    %59 = arith.index_cast %58 : i32 to index
    %c0_43 = arith.constant 0 : index
    %60 = vector.load %arg10[%59, %c0_43] : memref<256x128xf32, #tpu.memory_space<vmem>>, vector<1x128xf32>
    %c0_44 = arith.constant 0 : index
    %c14 = arith.constant 14 : index
    %61 = memref.load %arg2[%c0_44, %c14] : memref<2x16xi32, #tpu.memory_space<smem>>
    %62 = arith.index_cast %61 : i32 to index
    %c0_45 = arith.constant 0 : index
    %63 = vector.load %arg10[%62, %c0_45] : memref<256x128xf32, #tpu.memory_space<vmem>>, vector<1x128xf32>
    %c0_46 = arith.constant 0 : index
    %c15 = arith.constant 15 : index
    %64 = memref.load %arg2[%c0_46, %c15] : memref<2x16xi32, #tpu.memory_space<smem>>
    %65 = arith.index_cast %64 : i32 to index
    %c0_47 = arith.constant 0 : index
    %66 = vector.load %arg10[%65, %c0_47] : memref<256x128xf32, #tpu.memory_space<vmem>>, vector<1x128xf32>
    %67 = tpu.concatenate %21, %24, %27, %30, %33, %36, %39, %42, %45, %48, %51, %54, %57, %60, %63, %66 in 0 : vector<1x128xf32>, vector<1x128xf32>, vector<1x128xf32>, vector<1x128xf32>, vector<1x128xf32>, vector<1x128xf32>, vector<1x128xf32>, vector<1x128xf32>, vector<1x128xf32>, vector<1x128xf32>, vector<1x128xf32>, vector<1x128xf32>, vector<1x128xf32>, vector<1x128xf32>, vector<1x128xf32>, vector<1x128xf32> -> vector<16x128xf32>
    %c0_48 = arith.constant 0 : index
    %68 = memref.load %arg1[%c0_48] : memref<2xi32, #tpu.memory_space<smem>>
    %69 = vector.extract_strided_slice %17 {offsets = [0, 0], sizes = [1, 128], strides = [1, 1]} : vector<2x256xf32> to vector<1x128xf32>
    %c0_i32 = arith.constant 0 : i32
    %70 = arith.addi %68, %c0_i32 : i32
    %71 = vector.broadcast %70 : i32 to vector<16x1xi32>
    %72 = arith.cmpi eq, %18, %71 : vector<16x1xi32>
    %73 = vector.shape_cast %72 : vector<16x1xi1> to vector<16x1xi1>
    %74 = vector.broadcast %73 : vector<16x1xi1> to vector<16x128xi1>
    %75 = vector.shape_cast %69 : vector<1x128xf32> to vector<1x128xf32>
    %76 = vector.broadcast %75 : vector<1x128xf32> to vector<16x128xf32>
    %77 = arith.select %74, %76, %67 : vector<16x128xi1>, vector<16x128xf32>
    %78 = vector.extract_strided_slice %17 {offsets = [0, 128], sizes = [1, 128], strides = [1, 1]} : vector<2x256xf32> to vector<1x128xf32>
    %c1_i32 = arith.constant 1 : i32
    %79 = arith.addi %68, %c1_i32 : i32
    %80 = vector.broadcast %79 : i32 to vector<16x1xi32>
    %81 = arith.cmpi eq, %18, %80 : vector<16x1xi32>
    %82 = vector.shape_cast %81 : vector<16x1xi1> to vector<16x1xi1>
    %83 = vector.broadcast %82 : vector<16x1xi1> to vector<16x128xi1>
    %84 = vector.shape_cast %78 : vector<1x128xf32> to vector<1x128xf32>
    %85 = vector.broadcast %84 : vector<1x128xf32> to vector<16x128xf32>
    %86 = arith.select %83, %85, %77 : vector<16x128xi1>, vector<16x128xf32>
    %c0_49 = arith.constant 0 : index
    %c0_50 = arith.constant 0 : index
    %c0_51 = arith.constant 0 : index
    %87 = vector.load %arg11[%c0_49, %c0_50, %c0_51] : memref<2x16x128xf32, #tpu.memory_space<vmem>>, vector<1x16x128xf32>
    %88 = vector.shape_cast %87 : vector<1x16x128xf32> to vector<16x128xf32>
    %89 = vector.shape_cast %86 : vector<16x128xf32> to vector<1x16x128xf32>
    tpu.vector_store %arg11[%c0_49, %c0_50, %c0_51], %89 {strides = array<i32>} : memref<2x16x128xf32, #tpu.memory_space<vmem>>, vector<1x16x128xf32>,
    %c1_52 = arith.constant 1 : index
    %c0_53 = arith.constant 0 : index
    %90 = memref.load %arg2[%c1_52, %c0_53] : memref<2x16xi32, #tpu.memory_space<smem>>
    %91 = arith.index_cast %90 : i32 to index
    %c0_54 = arith.constant 0 : index
    %92 = vector.load %arg10[%91, %c0_54] : memref<256x128xf32, #tpu.memory_space<vmem>>, vector<1x128xf32>
    %c1_55 = arith.constant 1 : index
    %c1_56 = arith.constant 1 : index
    %93 = memref.load %arg2[%c1_55, %c1_56] : memref<2x16xi32, #tpu.memory_space<smem>>
    %94 = arith.index_cast %93 : i32 to index
    %c0_57 = arith.constant 0 : index
    %95 = vector.load %arg10[%94, %c0_57] : memref<256x128xf32, #tpu.memory_space<vmem>>, vector<1x128xf32>
    %c1_58 = arith.constant 1 : index
    %c2_59 = arith.constant 2 : index
    %96 = memref.load %arg2[%c1_58, %c2_59] : memref<2x16xi32, #tpu.memory_space<smem>>
    %97 = arith.index_cast %96 : i32 to index
    %c0_60 = arith.constant 0 : index
    %98 = vector.load %arg10[%97, %c0_60] : memref<256x128xf32, #tpu.memory_space<vmem>>, vector<1x128xf32>
    %c1_61 = arith.constant 1 : index
    %c3_62 = arith.constant 3 : index
    %99 = memref.load %arg2[%c1_61, %c3_62] : memref<2x16xi32, #tpu.memory_space<smem>>
    %100 = arith.index_cast %99 : i32 to index
    %c0_63 = arith.constant 0 : index
    %101 = vector.load %arg10[%100, %c0_63] : memref<256x128xf32, #tpu.memory_space<vmem>>, vector<1x128xf32>
    %c1_64 = arith.constant 1 : index
    %c4_65 = arith.constant 4 : index
    %102 = memref.load %arg2[%c1_64, %c4_65] : memref<2x16xi32, #tpu.memory_space<smem>>
    %103 = arith.index_cast %102 : i32 to index
    %c0_66 = arith.constant 0 : index
    %104 = vector.load %arg10[%103, %c0_66] : memref<256x128xf32, #tpu.memory_space<vmem>>, vector<1x128xf32>
    %c1_67 = arith.constant 1 : index
    %c5_68 = arith.constant 5 : index
    %105 = memref.load %arg2[%c1_67, %c5_68] : memref<2x16xi32, #tpu.memory_space<smem>>
    %106 = arith.index_cast %105 : i32 to index
    %c0_69 = arith.constant 0 : index
    %107 = vector.load %arg10[%106, %c0_69] : memref<256x128xf32, #tpu.memory_space<vmem>>, vector<1x128xf32>
    %c1_70 = arith.constant 1 : index
    %c6_71 = arith.constant 6 : index
    %108 = memref.load %arg2[%c1_70, %c6_71] : memref<2x16xi32, #tpu.memory_space<smem>>
    %109 = arith.index_cast %108 : i32 to index
    %c0_72 = arith.constant 0 : index
    %110 = vector.load %arg10[%109, %c0_72] : memref<256x128xf32, #tpu.memory_space<vmem>>, vector<1x128xf32>
    %c1_73 = arith.constant 1 : index
    %c7_74 = arith.constant 7 : index
    %111 = memref.load %arg2[%c1_73, %c7_74] : memref<2x16xi32, #tpu.memory_space<smem>>
    %112 = arith.index_cast %111 : i32 to index
    %c0_75 = arith.constant 0 : index
    %113 = vector.load %arg10[%112, %c0_75] : memref<256x128xf32, #tpu.memory_space<vmem>>, vector<1x128xf32>
    %c1_76 = arith.constant 1 : index
    %c8_77 = arith.constant 8 : index
    %114 = memref.load %arg2[%c1_76, %c8_77] : memref<2x16xi32, #tpu.memory_space<smem>>
    %115 = arith.index_cast %114 : i32 to index
    %c0_78 = arith.constant 0 : index
    %116 = vector.load %arg10[%115, %c0_78] : memref<256x128xf32, #tpu.memory_space<vmem>>, vector<1x128xf32>
    %c1_79 = arith.constant 1 : index
    %c9_80 = arith.constant 9 : index
    %117 = memref.load %arg2[%c1_79, %c9_80] : memref<2x16xi32, #tpu.memory_space<smem>>
    %118 = arith.index_cast %117 : i32 to index
    %c0_81 = arith.constant 0 : index
    %119 = vector.load %arg10[%118, %c0_81] : memref<256x128xf32, #tpu.memory_space<vmem>>, vector<1x128xf32>
    %c1_82 = arith.constant 1 : index
    %c10_83 = arith.constant 10 : index
    %120 = memref.load %arg2[%c1_82, %c10_83] : memref<2x16xi32, #tpu.memory_space<smem>>
    %121 = arith.index_cast %120 : i32 to index
    %c0_84 = arith.constant 0 : index
    %122 = vector.load %arg10[%121, %c0_84] : memref<256x128xf32, #tpu.memory_space<vmem>>, vector<1x128xf32>
    %c1_85 = arith.constant 1 : index
    %c11_86 = arith.constant 11 : index
    %123 = memref.load %arg2[%c1_85, %c11_86] : memref<2x16xi32, #tpu.memory_space<smem>>
    %124 = arith.index_cast %123 : i32 to index
    %c0_87 = arith.constant 0 : index
    %125 = vector.load %arg10[%124, %c0_87] : memref<256x128xf32, #tpu.memory_space<vmem>>, vector<1x128xf32>
    %c1_88 = arith.constant 1 : index
    %c12_89 = arith.constant 12 : index
    %126 = memref.load %arg2[%c1_88, %c12_89] : memref<2x16xi32, #tpu.memory_space<smem>>
    %127 = arith.index_cast %126 : i32 to index
    %c0_90 = arith.constant 0 : index
    %128 = vector.load %arg10[%127, %c0_90] : memref<256x128xf32, #tpu.memory_space<vmem>>, vector<1x128xf32>
    %c1_91 = arith.constant 1 : index
    %c13_92 = arith.constant 13 : index
    %129 = memref.load %arg2[%c1_91, %c13_92] : memref<2x16xi32, #tpu.memory_space<smem>>
    %130 = arith.index_cast %129 : i32 to index
    %c0_93 = arith.constant 0 : index
    %131 = vector.load %arg10[%130, %c0_93] : memref<256x128xf32, #tpu.memory_space<vmem>>, vector<1x128xf32>
    %c1_94 = arith.constant 1 : index
    %c14_95 = arith.constant 14 : index
    %132 = memref.load %arg2[%c1_94, %c14_95] : memref<2x16xi32, #tpu.memory_space<smem>>
    %133 = arith.index_cast %132 : i32 to index
    %c0_96 = arith.constant 0 : index
    %134 = vector.load %arg10[%133, %c0_96] : memref<256x128xf32, #tpu.memory_space<vmem>>, vector<1x128xf32>
    %c1_97 = arith.constant 1 : index
    %c15_98 = arith.constant 15 : index
    %135 = memref.load %arg2[%c1_97, %c15_98] : memref<2x16xi32, #tpu.memory_space<smem>>
    %136 = arith.index_cast %135 : i32 to index
    %c0_99 = arith.constant 0 : index
    %137 = vector.load %arg10[%136, %c0_99] : memref<256x128xf32, #tpu.memory_space<vmem>>, vector<1x128xf32>
    %138 = tpu.concatenate %92, %95, %98, %101, %104, %107, %110, %113, %116, %119, %122, %125, %128, %131, %134, %137 in 0 : vector<1x128xf32>, vector<1x128xf32>, vector<1x128xf32>, vector<1x128xf32>, vector<1x128xf32>, vector<1x128xf32>, vector<1x128xf32>, vector<1x128xf32>, vector<1x128xf32>, vector<1x128xf32>, vector<1x128xf32>, vector<1x128xf32>, vector<1x128xf32>, vector<1x128xf32>, vector<1x128xf32>, vector<1x128xf32> -> vector<16x128xf32>
    %c1_100 = arith.constant 1 : index
    %139 = memref.load %arg1[%c1_100] : memref<2xi32, #tpu.memory_space<smem>>
    %140 = vector.extract_strided_slice %17 {offsets = [1, 0], sizes = [1, 128], strides = [1, 1]} : vector<2x256xf32> to vector<1x128xf32>
    %c0_i32_101 = arith.constant 0 : i32
    %141 = arith.addi %139, %c0_i32_101 : i32
    %142 = vector.broadcast %141 : i32 to vector<16x1xi32>
    %143 = arith.cmpi eq, %18, %142 : vector<16x1xi32>
    %144 = vector.shape_cast %143 : vector<16x1xi1> to vector<16x1xi1>
    %145 = vector.broadcast %144 : vector<16x1xi1> to vector<16x128xi1>
    %146 = vector.shape_cast %140 : vector<1x128xf32> to vector<1x128xf32>
    %147 = vector.broadcast %146 : vector<1x128xf32> to vector<16x128xf32>
    %148 = arith.select %145, %147, %138 : vector<16x128xi1>, vector<16x128xf32>
    %149 = vector.extract_strided_slice %17 {offsets = [1, 128], sizes = [1, 128], strides = [1, 1]} : vector<2x256xf32> to vector<1x128xf32>
    %c1_i32_102 = arith.constant 1 : i32
    %150 = arith.addi %139, %c1_i32_102 : i32
    %151 = vector.broadcast %150 : i32 to vector<16x1xi32>
    %152 = arith.cmpi eq, %18, %151 : vector<16x1xi32>
    %153 = vector.shape_cast %152 : vector<16x1xi1> to vector<16x1xi1>
    %154 = vector.broadcast %153 : vector<16x1xi1> to vector<16x128xi1>
    %155 = vector.shape_cast %149 : vector<1x128xf32> to vector<1x128xf32>
    %156 = vector.broadcast %155 : vector<1x128xf32> to vector<16x128xf32>
    %157 = arith.select %154, %156, %148 : vector<16x128xi1>, vector<16x128xf32>
    %c1_103 = arith.constant 1 : index
    %c0_104 = arith.constant 0 : index
    %c0_105 = arith.constant 0 : index
    %158 = vector.load %arg11[%c1_103, %c0_104, %c0_105] : memref<2x16x128xf32, #tpu.memory_space<vmem>>, vector<1x16x128xf32>
    %159 = vector.shape_cast %158 : vector<1x16x128xf32> to vector<16x128xf32>
    %160 = vector.shape_cast %157 : vector<16x128xf32> to vector<1x16x128xf32>
    tpu.vector_store %arg11[%c1_103, %c0_104, %c0_105], %160 {strides = array<i32>} : memref<2x16x128xf32, #tpu.memory_space<vmem>>, vector<1x16x128xf32>,
    return
  }
  func.func @transform_0(%arg0: i32, %arg1: memref<2xi32, #tpu.memory_space<smem>>, %arg2: memref<2x16xi32, #tpu.memory_space<smem>>) -> (i32, i32) {
    %c0_i32 = arith.constant 0 : i32
    %c0_i32_0 = arith.constant 0 : i32
    %c0_i32_1 = arith.constant 0 : i32
    return %c0_i32, %c0_i32_0 : i32, i32
  }
  func.func @transform_1(%arg0: i32, %arg1: memref<2xi32, #tpu.memory_space<smem>>, %arg2: memref<2x16xi32, #tpu.memory_space<smem>>) -> (i32, i32) {
    %c0_i32 = arith.constant 0 : i32
    %c0_i32_0 = arith.constant 0 : i32
    %c0_i32_1 = arith.constant 0 : i32
    return %c0_i32, %c0_i32_0 : i32, i32
  }
  func.func @transform_2(%arg0: i32, %arg1: memref<2xi32, #tpu.memory_space<smem>>, %arg2: memref<2x16xi32, #tpu.memory_space<smem>>) -> (i32, i32) {
    %c0_i32 = arith.constant 0 : i32
    %c0_i32_0 = arith.constant 0 : i32
    %c0_i32_1 = arith.constant 0 : i32
    return %c0_i32, %c0_i32_0 : i32, i32
  }
  func.func @transform_3(%arg0: i32, %arg1: memref<2xi32, #tpu.memory_space<smem>>, %arg2: memref<2x16xi32, #tpu.memory_space<smem>>) -> (i32, i32) {
    %c0_i32 = arith.constant 0 : i32
    %c0_i32_0 = arith.constant 0 : i32
    %c0_i32_1 = arith.constant 0 : i32
    return %c0_i32, %c0_i32_0 : i32, i32
  }
  func.func @transform_4(%arg0: i32, %arg1: memref<2xi32, #tpu.memory_space<smem>>, %arg2: memref<2x16xi32, #tpu.memory_space<smem>>) -> (i32, i32) {
    %c0_i32 = arith.constant 0 : i32
    %c0_i32_0 = arith.constant 0 : i32
    %c0_i32_1 = arith.constant 0 : i32
    return %c0_i32, %c0_i32_0 : i32, i32
  }
  func.func @transform_5(%arg0: i32, %arg1: memref<2xi32, #tpu.memory_space<smem>>, %arg2: memref<2x16xi32, #tpu.memory_space<smem>>) -> (i32, i32) {
    %c0_i32 = arith.constant 0 : i32
    %c0_i32_0 = arith.constant 0 : i32
    %c0_i32_1 = arith.constant 0 : i32
    return %c0_i32, %c0_i32_0 : i32, i32
  }
  func.func @transform_6(%arg0: i32, %arg1: memref<2xi32, #tpu.memory_space<smem>>, %arg2: memref<2x16xi32, #tpu.memory_space<smem>>) -> (i32, i32) {
    %c0_i32 = arith.constant 0 : i32
    %c0_i32_0 = arith.constant 0 : i32
    %c0_i32_1 = arith.constant 0 : i32
    return %c0_i32, %c0_i32_0 : i32, i32
  }
  func.func @transform_7(%arg0: i32, %arg1: memref<2xi32, #tpu.memory_space<smem>>, %arg2: memref<2x16xi32, #tpu.memory_space<smem>>) -> (i32, i32) {
    %c0_i32 = arith.constant 0 : i32
    %c0_i32_0 = arith.constant 0 : i32
    %c0_i32_1 = arith.constant 0 : i32
    return %c0_i32, %c0_i32_0 : i32, i32
  }
  func.func @transform_8(%arg0: i32, %arg1: memref<2xi32, #tpu.memory_space<smem>>, %arg2: memref<2x16xi32, #tpu.memory_space<smem>>) -> (i32, i32, i32) {
    %c0_i32 = arith.constant 0 : i32
    %c0_i32_0 = arith.constant 0 : i32
    %c0_i32_1 = arith.constant 0 : i32
    %c0_i32_2 = arith.constant 0 : i32
    return %c0_i32, %c0_i32_0, %c0_i32_1 : i32, i32, i32
  }
}

</mosaic_0001>

<llo_original>
// kernel: vqamed_forward.1
$region0: #{vqamed_forward.1}
  #allocation0 [shape = 'u32[]', space=smem, size = 0x4, offset = 0x4, fixed_abs, tag = 'smem constant byte address 0x4 - core index']
  #allocation1 [shape = 'u32[144,128]{1,0:T(1,128)}', space=vmem, size = 0x12000, scoped, tag = 'internal scratch']
  #allocation2 [shape = 's32[1]{0}', space=sflag, size = 0x4, scoped, tag = 'scoped memory for vqamed_forward.1']
  #allocation3 [shape = 'u8[512]{0}', space=smem, size = 0x200, scoped, tag = 'prefetched SMEM operand 0']
  #allocation4 [shape = 'u8[1024]{0}', space=smem, size = 0x400, scoped, tag = 'prefetched SMEM operand 1']
  %s0 = inlined_call_operand.vmem [shape: s32[2], index: 0, kind: input, shape index: {}]
  %s1 = inlined_call_operand.vmem [shape: s32[2,16], index: 1, kind: input, shape index: {}]
  %s2 = inlined_call_operand.hbm [shape: f32[2,128], index: 2, kind: input, shape index: {}]
  %s3 = inlined_call_operand.hbm [shape: f32[128,128], index: 3, kind: input, shape index: {}]
  %s4 = inlined_call_operand.vmem [shape: f32[1,128], index: 4, kind: input, shape index: {}]
  %s5 = inlined_call_operand.hbm [shape: f32[128,256], index: 5, kind: input, shape index: {}]
  %s6 = inlined_call_operand.vmem [shape: f32[1,256], index: 6, kind: input, shape index: {}]
  %s7 = inlined_call_operand.hbm [shape: f32[256,256], index: 7, kind: input, shape index: {}]
  %s8 = inlined_call_operand.vmem [shape: f32[1,256], index: 8, kind: input, shape index: {}]
  %s9 = inlined_call_operand.hbm [shape: f32[256,128], index: 9, kind: input, shape index: {}]
  %s10 = inlined_call_operand.hbm [shape: f32[2,16,128], index: 10, kind: output, shape index: {}]
  %s11 = sld [smem:[#allocation0]]
  $region62: #{vqamed_forward.1} parent=0
    _
  %s13 = ssub.s32 1, %s11
  %s14 = scalar_select 0, %s13, %s11
  %s15 = sshll.u32 %s0, 4
  %s16 = int_to_ptr.vmem [resolvable:$true] %s15
  %18 = dma.vmem_to_smem %s16, 16, [#allocation3], [#allocation2]
  %s19 = sshll.u32 %s1, 4
  %s20 = int_to_ptr.vmem [resolvable:$true] %s19
  %22 = dma.vmem_to_smem %s20, 32, [#allocation4], [#allocation2]
  %23 = dma.done [#allocation2], 48
  %24 = sfence
  $region1: #{vqamed_forward.1} parent=0
    #allocation5 [shape = 'u8[1024]{0}', space=vmem, size = 0x400, scoped, tag = 'input window, operand 2, single buffered']
    #allocation6 [shape = 's32[1]{0}', space=sflag, size = 0x4, scoped, tag = 'scoped memory for vqamed_forward.1']
    #allocation7 [shape = 's32[1]{0}', space=sflag, size = 0x4, scoped, tag = 'scoped memory for vqamed_forward.1']
    #allocation8 [shape = 'u8[65536]{0}', space=vmem, size = 0x10000, scoped, tag = 'input window, operand 3, single buffered']
    #allocation9 [shape = 's32[1]{0}', space=sflag, size = 0x4, scoped, tag = 'scoped memory for vqamed_forward.1']
    #allocation10 [shape = 'u8[131072]{0}', space=vmem, size = 0x20000, scoped, tag = 'input window, operand 5, single buffered']
    #allocation11 [shape = 'u8[262144]{0}', space=vmem, size = 0x40000, scoped, tag = 'input window, operand 7, single buffered']
    #allocation12 [shape = 's32[1]{0}', space=sflag, size = 0x4, scoped, tag = 'scoped memory for vqamed_forward.1']
    #allocation13 [shape = 'u8[131072]{0}', space=vmem, size = 0x20000, scoped, tag = 'input window, operand 9, single buffered']
    #allocation14 [shape = 'u8[16384]{0}', space=vmem, size = 0x4000, scoped, tag = 'output window, operand 0, single buffered']
    %25 = vsyncpa [#allocation6], 0
    %26 = vsyncpa [#allocation9], 0
    %27 = vsyncpa [#allocation12], 0
    %28 = vsyncpa [#allocation7], 0
    // Predicated region
    $region2: #{vqamed_forward.1} parent=1 // pred_check
      _
    $region3: #{vqamed_forward.1} parent=1 // pred_check_branch
      %30 = sbr.rel (0) target = $region5
    $region4: #{vqamed_forward.1} parent=1 // pred_region
      %s32 = ssub.s32 32, 32
      %33 = vsyncadd [#allocation6], %s32
      %s35 = sshll.u32 [#allocation5], 4
      %s36 = int_to_ptr.vmem [resolvable:$true] %s35
      %38 = dma.hbm_to_vmem [thread:$0]  %s2, 32, %s36, [#allocation6]
    $region5: #{vqamed_forward.1} parent=1 // pred_fallthru
      _
    // Predicated region
    $region6: #{vqamed_forward.1} parent=1 // pred_check
      _
    $region7: #{vqamed_forward.1} parent=1 // pred_check_branch
      %40 = sbr.rel (0) target = $region9
    $region8: #{vqamed_forward.1} parent=1 // pred_region
      %s42 = ssub.s32 2048, 2048
      %43 = vsyncadd [#allocation9], %s42
      %s44 = sshll.u32 [#allocation8], 4
      %s45 = int_to_ptr.vmem [resolvable:$true] %s44
      %50 = dma.hbm_to_vmem [thread:$0]  %s3, 2048, %s45, [#allocation9], 128, 128, 8
    $region9: #{vqamed_forward.1} parent=1 // pred_fallthru
      _
    // Predicated region
    $region10: #{vqamed_forward.1} parent=1 // pred_check
      _
    $region11: #{vqamed_forward.1} parent=1 // pred_check_branch
      %52 = sbr.rel (0) target = $region13
    $region12: #{vqamed_forward.1} parent=1 // pred_region
      _
    $region13: #{vqamed_forward.1} parent=1 // pred_fallthru
      _
    // Predicated region
    $region14: #{vqamed_forward.1} parent=1 // pred_check
      _
    $region15: #{vqamed_forward.1} parent=1 // pred_check_branch
      %54 = sbr.rel (0) target = $region17
    $region16: #{vqamed_forward.1} parent=1 // pred_region
      %s56 = ssub.s32 4096, 4096
      %57 = vsyncadd [#allocation9], %s56
      %s58 = sshll.u32 [#allocation10], 4
      %s59 = int_to_ptr.vmem [resolvable:$true] %s58
      %64 = dma.hbm_to_vmem [thread:$0]  %s5, 4096, %s59, [#allocation9], 256, 256, 16
    $region17: #{vqamed_forward.1} parent=1 // pred_fallthru
      _
    // Predicated region
    $region18: #{vqamed_forward.1} parent=1 // pred_check
      _
    $region19: #{vqamed_forward.1} parent=1 // pred_check_branch
      %66 = sbr.rel (0) target = $region21
    $region20: #{vqamed_forward.1} parent=1 // pred_region
      _
    $region21: #{vqamed_forward.1} parent=1 // pred_fallthru
      _
    // Predicated region
    $region22: #{vqamed_forward.1} parent=1 // pred_check
      _
    $region23: #{vqamed_forward.1} parent=1 // pred_check_branch
      %68 = sbr.rel (0) target = $region25
    $region24: #{vqamed_forward.1} parent=1 // pred_region
      %s70 = ssub.s32 8192, 8192
      %71 = vsyncadd [#allocation12], %s70
      %s72 = sshll.u32 [#allocation11], 4
      %s73 = int_to_ptr.vmem [resolvable:$true] %s72
      %78 = dma.hbm_to_vmem [thread:$0]  %s7, 8192, %s73, [#allocation12], 256, 256, 16
    $region25: #{vqamed_forward.1} parent=1 // pred_fallthru
      _
    // Predicated region
    $region26: #{vqamed_forward.1} parent=1 // pred_check
      _
    $region27: #{vqamed_forward.1} parent=1 // pred_check_branch
      %80 = sbr.rel (0) target = $region29
    $region28: #{vqamed_forward.1} parent=1 // pred_region
      _
    $region29: #{vqamed_forward.1} parent=1 // pred_fallthru
      _
    // Predicated region
    $region30: #{vqamed_forward.1} parent=1 // pred_check
      _
    $region31: #{vqamed_forward.1} parent=1 // pred_check_branch
      %82 = sbr.rel (0) target = $region33
    $region32: #{vqamed_forward.1} parent=1 // pred_region
      %s84 = ssub.s32 4096, 4096
      %85 = vsyncadd [#allocation12], %s84
      %s86 = sshll.u32 [#allocation13], 4
      %s87 = int_to_ptr.vmem [resolvable:$true] %s86
      %92 = dma.hbm_to_vmem [thread:$0]  %s9, 4096, %s87, [#allocation12], 128, 128, 8
    $region33: #{vqamed_forward.1} parent=1 // pred_fallthru
      _
    // Predicated region
    $region34: #{vqamed_forward.1} parent=1 // pred_check
      _
    $region35: #{vqamed_forward.1} parent=1 // pred_check_branch
      %94 = sbr.rel (0) target = $region37
    $region36: #{vqamed_forward.1} parent=1 // pred_region
      %95 = dma.done [#allocation6], 32
    $region37: #{vqamed_forward.1} parent=1 // pred_fallthru
      _
    // Predicated region
    $region38: #{vqamed_forward.1} parent=1 // pred_check
      _
    $region39: #{vqamed_forward.1} parent=1 // pred_check_branch
      %97 = sbr.rel (0) target = $region41
    $region40: #{vqamed_forward.1} parent=1 // pred_region
      %98 = dma.done [#allocation9], 2048
    $region41: #{vqamed_forward.1} parent=1 // pred_fallthru
      _
    // Predicated region
    $region42: #{vqamed_forward.1} parent=1 // pred_check
      _
    $region43: #{vqamed_forward.1} parent=1 // pred_check_branch
      %100 = sbr.rel (0) target = $region45
    $region44: #{vqamed_forward.1} parent=1 // pred_region
      %101 = dma.done [#allocation9], 4096
    $region45: #{vqamed_forward.1} parent=1 // pred_fallthru
      _
    // Predicated region
    $region46: #{vqamed_forward.1} parent=1 // pred_check
      _
    $region47: #{vqamed_forward.1} parent=1 // pred_check_branch
      %103 = sbr.rel (0) target = $region49
    $region48: #{vqamed_forward.1} parent=1 // pred_region
      %104 = dma.done [#allocation12], 8192
    $region49: #{vqamed_forward.1} parent=1 // pred_fallthru
      _
    // Predicated region
    $region50: #{vqamed_forward.1} parent=1 // pred_check
      _
    $region51: #{vqamed_forward.1} parent=1 // pred_check_branch
      %106 = sbr.rel (0) target = $region53
    $region52: #{vqamed_forward.1} parent=1 // pred_region
      %107 = dma.done [#allocation12], 4096
    $region53: #{vqamed_forward.1} parent=1 // pred_fallthru
      _
    %v108 = vld [vmem:[#allocation5] sm:$0x3]
    %v109 = vld [vmem:[#allocation8] sm:$0xff]
    %v110 = vld [vmem:[#allocation8 + $0x8] sm:$0xff]
    %v111 = vld [vmem:[#allocation8 + $0x10] sm:$0xff]
    %v112 = vld [vmem:[#allocation8 + $0x18] sm:$0xff]
    %v113 = vld [vmem:[#allocation8 + $0x20] sm:$0xff]
    %v114 = vld [vmem:[#allocation8 + $0x28] sm:$0xff]
    %v115 = vld [vmem:[#allocation8 + $0x30] sm:$0xff]
    %v116 = vld [vmem:[#allocation8 + $0x38] sm:$0xff]
    %v117 = vld [vmem:[#allocation8 + $0x40] sm:$0xff]
    %v118 = vld [vmem:[#allocation8 + $0x48] sm:$0xff]
    %v119 = vld [vmem:[#allocation8 + $0x50] sm:$0xff]
    %v120 = vld [vmem:[#allocation8 + $0x58] sm:$0xff]
    %v121 = vld [vmem:[#allocation8 + $0x60] sm:$0xff]
    %v122 = vld [vmem:[#allocation8 + $0x68] sm:$0xff]
    %v123 = vld [vmem:[#allocation8 + $0x70] sm:$0xff]
    %v124 = vld [vmem:[#allocation8 + $0x78] sm:$0xff]
    %v125 = vld [vmem:[%s4] sm:$0x1]
    %v127 = vlaneseq
    %v128 = vshrl.u32 %v127, 7
    %v129 = vsub.s32 0, %v128
    %v130 = vrot.slane %v125, %v129
    %132 = vmatprep.subr.mxu0 0.0
    %133 = vmatpush1.msra.mxu0 %v109
    %134 = vmatprep.subr.mxu0 0.0
    %135 = vmatpush1.msra.mxu0 %v110
    %136 = vmatprep.subr.mxu0 0.0
    %137 = vmatpush1.msra.mxu0 %v111
    %138 = vmatprep.subr.mxu0 0.0
    %139 = vmatpush1.msra.mxu0 %v112
    %140 = vmatprep.subr.mxu0 0.0
    %141 = vmatpush1.msra.mxu0 %v113
    %142 = vmatprep.subr.mxu0 0.0
    %143 = vmatpush1.msra.mxu0 %v114
    %144 = vmatprep.subr.mxu0 0.0
    %145 = vmatpush1.msra.mxu0 %v115
    %146 = vmatprep.subr.mxu0 0.0
    %147 = vmatpush1.msra.mxu0 %v116
    %148 = vmatprep.subr.mxu0 0.0
    %149 = vmatpush1.msra.mxu0 %v117
    %150 = vmatprep.subr.mxu0 0.0
    %151 = vmatpush1.msra.mxu0 %v118
    %152 = vmatprep.subr.mxu0 0.0
    %153 = vmatpush1.msra.mxu0 %v119
    %154 = vmatprep.subr.mxu0 0.0
    %155 = vmatpush1.msra.mxu0 %v120
    %156 = vmatprep.subr.mxu0 0.0
    %157 = vmatpush1.msra.mxu0 %v121
    %158 = vmatprep.subr.mxu0 0.0
    %159 = vmatpush1.msra.mxu0 %v122
    %160 = vmatprep.subr.mxu0 0.0
    %161 = vmatpush1.msra.mxu0 %v123
    %162 = vmatprep.subr.mxu0 0.0
    %163 = vmatpush1.msra.mxu0 %v124
    %164 = vmatprep.subr.mxu0 0.0
    %165 = vmatpush1.msra.mxu0 0.0
    %166 = vmatprep.subr.mxu0 0.0
    %167 = vmatpush1.msra.mxu0 0.0
    %168 = vmatprep.subr.mxu0 0.0
    %169 = vmatpush1.msra.mxu0 0.0
    %170 = vmatprep.subr.mxu0 0.0
    %171 = vmatpush1.msra.mxu0 0.0
    %172 = vmatprep.subr.mxu0 0.0
    %173 = vmatpush1.msra.mxu0 0.0
    %174 = vmatprep.subr.mxu0 0.0
    %175 = vmatpush1.msra.mxu0 0.0
    %176 = vmatprep.subr.mxu0 0.0
    %177 = vmatpush1.msra.mxu0 0.0
    %178 = vmatprep.subr.mxu0 0.0
    %179 = vmatpush1.msra.mxu0 0.0
    %180 = vmatprep.subr.mxu0 0.0
    %181 = vmatpush1.msra.mxu0 0.0
    %182 = vmatprep.subr.mxu0 0.0
    %183 = vmatpush1.msra.mxu0 0.0
    %184 = vmatprep.subr.mxu0 0.0
    %185 = vmatpush1.msra.mxu0 0.0
    %186 = vmatprep.subr.mxu0 0.0
    %187 = vmatpush1.msra.mxu0 0.0
    %188 = vmatprep.subr.mxu0 0.0
    %189 = vmatpush1.msra.mxu0 0.0
    %190 = vmatprep.subr.mxu0 0.0
    %191 = vmatpush1.msra.mxu0 0.0
    %192 = vmatprep.subr.mxu0 0.0
    %193 = vmatpush1.msra.mxu0 0.0
    %194 = vmatprep.subr.mxu0 0.0
    %195 = vmatpush1.msra.mxu0 0.0
    %196 = vmatprep.mubr.f32.mxu0 0.0
    %197 = vmatmul.mubr.f32.gmra.mrb[0].mxu0 %v108
    %v198 = vpop.f32.mrb[0].mxu0
    %v199 = vadd.f32 %v130, %v198
    %v200 = vpop.f32.mrb[0].mxu0
    %201 = vdwg.mxu0
    %v202 = vtanh.pop %v199
    %v203 = vld [vmem:[#allocation10] sm:$0xff]
    %v204 = vld [vmem:[#allocation10 + $0x8] sm:$0xff]
    %v205 = vld [vmem:[#allocation10 + $0x10] sm:$0xff]
    %v206 = vld [vmem:[#allocation10 + $0x18] sm:$0xff]
    %v207 = vld [vmem:[#allocation10 + $0x20] sm:$0xff]
    %v208 = vld [vmem:[#allocation10 + $0x28] sm:$0xff]
    %v209 = vld [vmem:[#allocation10 + $0x30] sm:$0xff]
    %v210 = vld [vmem:[#allocation10 + $0x38] sm:$0xff]
    %v211 = vld [vmem:[#allocation10 + $0x40] sm:$0xff]
    %v212 = vld [vmem:[#allocation10 + $0x48] sm:$0xff]
    %v213 = vld [vmem:[#allocation10 + $0x50] sm:$0xff]
    %v214 = vld [vmem:[#allocation10 + $0x58] sm:$0xff]
    %v215 = vld [vmem:[#allocation10 + $0x60] sm:$0xff]
    %v216 = vld [vmem:[#allocation10 + $0x68] sm:$0xff]
    %v217 = vld [vmem:[#allocation10 + $0x70] sm:$0xff]
    %v218 = vld [vmem:[#allocation10 + $0x78] sm:$0xff]
    %v219 = vld [vmem:[#allocation10 + $0x80] sm:$0xff]
    %v220 = vld [vmem:[#allocation10 + $0x88] sm:$0xff]
    %v221 = vld [vmem:[#allocation10 + $0x90] sm:$0xff]
    %v222 = vld [vmem:[#allocation10 + $0x98] sm:$0xff]
    %v223 = vld [vmem:[#allocation10 + $0xa0] sm:$0xff]
    %v224 = vld [vmem:[#allocation10 + $0xa8] sm:$0xff]
    %v225 = vld [vmem:[#allocation10 + $0xb0] sm:$0xff]
    %v226 = vld [vmem:[#allocation10 + $0xb8] sm:$0xff]
    %v227 = vld [vmem:[#allocation10 + $0xc0] sm:$0xff]
    %v228 = vld [vmem:[#allocation10 + $0xc8] sm:$0xff]
    %v229 = vld [vmem:[#allocation10 + $0xd0] sm:$0xff]
    %v230 = vld [vmem:[#allocation10 + $0xd8] sm:$0xff]
    %v231 = vld [vmem:[#allocation10 + $0xe0] sm:$0xff]
    %v232 = vld [vmem:[#allocation10 + $0xe8] sm:$0xff]
    %v233 = vld [vmem:[#allocation10 + $0xf0] sm:$0xff]
    %v234 = vld [vmem:[#allocation10 + $0xf8] sm:$0xff]
    %v235 = vld [vmem:[%s6] sm:$0x3]
    %v237 = vlaneseq
    %v238 = vshrl.u32 %v237, 7
    %v239 = vsub.s32 0, %v238
    %v240 = vrot.slane %v235, %v239
    %v241 = vlaneseq
    %v242 = vshrl.u32 %v241, 7
    %v243 = vsub.s32 1, %v242
    %v244 = vrot.slane %v235, %v243
    %247 = vmatprep.subr.mxu0 %v204
    %248 = vmatpush1.msra.mxu0 %v203
    %249 = vmatprep.subr.mxu0 %v206
    %250 = vmatpush1.msra.mxu0 %v205
    %251 = vmatprep.subr.mxu0 %v208
    %252 = vmatpush1.msra.mxu0 %v207
    %253 = vmatprep.subr.mxu0 %v210
    %254 = vmatpush1.msra.mxu0 %v209
    %255 = vmatprep.subr.mxu0 %v212
    %256 = vmatpush1.msra.mxu0 %v211
    %257 = vmatprep.subr.mxu0 %v214
    %258 = vmatpush1.msra.mxu0 %v213
    %259 = vmatprep.subr.mxu0 %v216
    %260 = vmatpush1.msra.mxu0 %v215
    %261 = vmatprep.subr.mxu0 %v218
    %262 = vmatpush1.msra.mxu0 %v217
    %263 = vmatprep.subr.mxu0 %v220
    %264 = vmatpush1.msra.mxu0 %v219
    %265 = vmatprep.subr.mxu0 %v222
    %266 = vmatpush1.msra.mxu0 %v221
    %267 = vmatprep.subr.mxu0 %v224
    %268 = vmatpush1.msra.mxu0 %v223
    %269 = vmatprep.subr.mxu0 %v226
    %270 = vmatpush1.msra.mxu0 %v225
    %271 = vmatprep.subr.mxu0 %v228
    %272 = vmatpush1.msra.mxu0 %v227
    %273 = vmatprep.subr.mxu0 %v230
    %274 = vmatpush1.msra.mxu0 %v229
    %275 = vmatprep.subr.mxu0 %v232
    %276 = vmatpush1.msra.mxu0 %v231
    %277 = vmatprep.subr.mxu0 %v234
    %278 = vmatpush1.msra.mxu0 %v233
    %279 = vmatprep.subr.mxu0 0.0
    %280 = vmatpush1.msra.mxu0 0.0
    %281 = vmatprep.subr.mxu0 0.0
    %282 = vmatpush1.msra.mxu0 0.0
    %283 = vmatprep.subr.mxu0 0.0
    %284 = vmatpush1.msra.mxu0 0.0
    %285 = vmatprep.subr.mxu0 0.0
    %286 = vmatpush1.msra.mxu0 0.0
    %287 = vmatprep.subr.mxu0 0.0
    %288 = vmatpush1.msra.mxu0 0.0
    %289 = vmatprep.subr.mxu0 0.0
    %290 = vmatpush1.msra.mxu0 0.0
    %291 = vmatprep.subr.mxu0 0.0
    %292 = vmatpush1.msra.mxu0 0.0
    %293 = vmatprep.subr.mxu0 0.0
    %294 = vmatpush1.msra.mxu0 0.0
    %295 = vmatprep.subr.mxu0 0.0
    %296 = vmatpush1.msra.mxu0 0.0
    %297 = vmatprep.subr.mxu0 0.0
    %298 = vmatpush1.msra.mxu0 0.0
    %299 = vmatprep.subr.mxu0 0.0
    %300 = vmatpush1.msra.mxu0 0.0
    %301 = vmatprep.subr.mxu0 0.0
    %302 = vmatpush1.msra.mxu0 0.0
    %303 = vmatprep.subr.mxu0 0.0
    %304 = vmatpush1.msra.mxu0 0.0
    %305 = vmatprep.subr.mxu0 0.0
    %306 = vmatpush1.msra.mxu0 0.0
    %307 = vmatprep.subr.mxu0 0.0
    %308 = vmatpush1.msra.mxu0 0.0
    %309 = vmatprep.subr.mxu0 0.0
    %310 = vmatpush1.msra.mxu0 0.0
    %311 = vmatprep.mubr.f32.mxu0 0.0
    %312 = vmatmul.mubr.f32.gmra.mrb[0].mxu0 %v202
    %v313 = vpop.f32.mrb[0].mxu0
    %v314 = vadd.f32 %v240, %v313
    %v315 = vpop.f32.mrb[0].mxu0
    %v316 = vadd.f32 %v244, %v315
    %317 = vdwg.mxu0
    %v318 = vtanh.pop %v314
    %v319 = vtanh.pop %v316
    %v320 = vld [vmem:[#allocation11] sm:$0xff]
    %v321 = vld [vmem:[#allocation11 + $0x8] sm:$0xff]
    %v322 = vld [vmem:[#allocation11 + $0x10] sm:$0xff]
    %v323 = vld [vmem:[#allocation11 + $0x18] sm:$0xff]
    %v324 = vld [vmem:[#allocation11 + $0x20] sm:$0xff]
    %v325 = vld [vmem:[#allocation11 + $0x28] sm:$0xff]
    %v326 = vld [vmem:[#allocation11 + $0x30] sm:$0xff]
    %v327 = vld [vmem:[#allocation11 + $0x38] sm:$0xff]
    %v328 = vld [vmem:[#allocation11 + $0x40] sm:$0xff]
    %v329 = vld [vmem:[#allocation11 + $0x48] sm:$0xff]
    %v330 = vld [vmem:[#allocation11 + $0x50] sm:$0xff]
    %v331 = vld [vmem:[#allocation11 + $0x58] sm:$0xff]
    %v332 = vld [vmem:[#allocation11 + $0x60] sm:$0xff]
    %v333 = vld [vmem:[#allocation11 + $0x68] sm:$0xff]
    %v334 = vld [vmem:[#allocation11 + $0x70] sm:$0xff]
    %v335 = vld [vmem:[#allocation11 + $0x78] sm:$0xff]
    %v336 = vld [vmem:[#allocation11 + $0x80] sm:$0xff]
    %v337 = vld [vmem:[#allocation11 + $0x88] sm:$0xff]
    %v338 = vld [vmem:[#allocation11 + $0x90] sm:$0xff]
    %v339 = vld [vmem:[#allocation11 + $0x98] sm:$0xff]
    %v340 = vld [vmem:[#allocation11 + $0xa0] sm:$0xff]
    %v341 = vld [vmem:[#allocation11 + $0xa8] sm:$0xff]
    %v342 = vld [vmem:[#allocation11 + $0xb0] sm:$0xff]
    %v343 = vld [vmem:[#allocation11 + $0xb8] sm:$0xff]
    %v344 = vld [vmem:[#allocation11 + $0xc0] sm:$0xff]
    %v345 = vld [vmem:[#allocation11 + $0xc8] sm:$0xff]
    %v346 = vld [vmem:[#allocation11 + $0xd0] sm:$0xff]
    %v347 = vld [vmem:[#allocation11 + $0xd8] sm:$0xff]
    %v348 = vld [vmem:[#allocation11 + $0xe0] sm:$0xff]
    %v349 = vld [vmem:[#allocation11 + $0xe8] sm:$0xff]
    %v350 = vld [vmem:[#allocation11 + $0xf0] sm:$0xff]
    %v351 = vld [vmem:[#allocation11 + $0xf8] sm:$0xff]
    %v352 = vld [vmem:[#allocation11 + $0x100] sm:$0xff]
    %v353 = vld [vmem:[#allocation11 + $0x108] sm:$0xff]
    %v354 = vld [vmem:[#allocation11 + $0x110] sm:$0xff]
    %v355 = vld [vmem:[#allocation11 + $0x118] sm:$0xff]
    %v356 = vld [vmem:[#allocation11 + $0x120] sm:$0xff]
    %v357 = vld [vmem:[#allocation11 + $0x128] sm:$0xff]
    %v358 = vld [vmem:[#allocation11 + $0x130] sm:$0xff]
    %v359 = vld [vmem:[#allocation11 + $0x138] sm:$0xff]
    %v360 = vld [vmem:[#allocation11 + $0x140] sm:$0xff]
    %v361 = vld [vmem:[#allocation11 + $0x148] sm:$0xff]
    %v362 = vld [vmem:[#allocation11 + $0x150] sm:$0xff]
    %v363 = vld [vmem:[#allocation11 + $0x158] sm:$0xff]
    %v364 = vld [vmem:[#allocation11 + $0x160] sm:$0xff]
    %v365 = vld [vmem:[#allocation11 + $0x168] sm:$0xff]
    %v366 = vld [vmem:[#allocation11 + $0x170] sm:$0xff]
    %v367 = vld [vmem:[#allocation11 + $0x178] sm:$0xff]
    %v368 = vld [vmem:[#allocation11 + $0x180] sm:$0xff]
    %v369 = vld [vmem:[#allocation11 + $0x188] sm:$0xff]
    %v370 = vld [vmem:[#allocation11 + $0x190] sm:$0xff]
    %v371 = vld [vmem:[#allocation11 + $0x198] sm:$0xff]
    %v372 = vld [vmem:[#allocation11 + $0x1a0] sm:$0xff]
    %v373 = vld [vmem:[#allocation11 + $0x1a8] sm:$0xff]
    %v374 = vld [vmem:[#allocation11 + $0x1b0] sm:$0xff]
    %v375 = vld [vmem:[#allocation11 + $0x1b8] sm:$0xff]
    %v376 = vld [vmem:[#allocation11 + $0x1c0] sm:$0xff]
    %v377 = vld [vmem:[#allocation11 + $0x1c8] sm:$0xff]
    %v378 = vld [vmem:[#allocation11 + $0x1d0] sm:$0xff]
    %v379 = vld [vmem:[#allocation11 + $0x1d8] sm:$0xff]
    %v380 = vld [vmem:[#allocation11 + $0x1e0] sm:$0xff]
    %v381 = vld [vmem:[#allocation11 + $0x1e8] sm:$0xff]
    %v382 = vld [vmem:[#allocation11 + $0x1f0] sm:$0xff]
    %v383 = vld [vmem:[#allocation11 + $0x1f8] sm:$0xff]
    %v384 = vld [vmem:[%s8] sm:$0x3]
    %v386 = vlaneseq
    %v387 = vshrl.u32 %v386, 7
    %v388 = vsub.s32 0, %v387
    %v389 = vrot.slane %v384, %v388
    %v390 = vlaneseq
    %v391 = vshrl.u32 %v390, 7
    %v392 = vsub.s32 1, %v391
    %v393 = vrot.slane %v384, %v392
    %396 = vmatprep.subr.mxu0 %v321
    %397 = vmatpush1.msra.mxu0 %v320
    %398 = vmatprep.subr.mxu0 %v323
    %399 = vmatpush1.msra.mxu0 %v322
    %400 = vmatprep.subr.mxu0 %v325
    %401 = vmatpush1.msra.mxu0 %v324
    %402 = vmatprep.subr.mxu0 %v327
    %403 = vmatpush1.msra.mxu0 %v326
    %404 = vmatprep.subr.mxu0 %v329
    %405 = vmatpush1.msra.mxu0 %v328
    %406 = vmatprep.subr.mxu0 %v331
    %407 = vmatpush1.msra.mxu0 %v330
    %408 = vmatprep.subr.mxu0 %v333
    %409 = vmatpush1.msra.mxu0 %v332
    %410 = vmatprep.subr.mxu0 %v335
    %411 = vmatpush1.msra.mxu0 %v334
    %412 = vmatprep.subr.mxu0 %v337
    %413 = vmatpush1.msra.mxu0 %v336
    %414 = vmatprep.subr.mxu0 %v339
    %415 = vmatpush1.msra.mxu0 %v338
    %416 = vmatprep.subr.mxu0 %v341
    %417 = vmatpush1.msra.mxu0 %v340
    %418 = vmatprep.subr.mxu0 %v343
    %419 = vmatpush1.msra.mxu0 %v342
    %420 = vmatprep.subr.mxu0 %v345
    %421 = vmatpush1.msra.mxu0 %v344
    %422 = vmatprep.subr.mxu0 %v347
    %423 = vmatpush1.msra.mxu0 %v346
    %424 = vmatprep.subr.mxu0 %v349
    %425 = vmatpush1.msra.mxu0 %v348
    %426 = vmatprep.subr.mxu0 %v351
    %427 = vmatpush1.msra.mxu0 %v350
    %428 = vmatprep.subr.mxu0 %v353
    %429 = vmatpush1.msra.mxu0 %v352
    %430 = vmatprep.subr.mxu0 %v355
    %431 = vmatpush1.msra.mxu0 %v354
    %432 = vmatprep.subr.mxu0 %v357
    %433 = vmatpush1.msra.mxu0 %v356
    %434 = vmatprep.subr.mxu0 %v359
    %435 = vmatpush1.msra.mxu0 %v358
    %436 = vmatprep.subr.mxu0 %v361
    %437 = vmatpush1.msra.mxu0 %v360
    %438 = vmatprep.subr.mxu0 %v363
    %439 = vmatpush1.msra.mxu0 %v362
    %440 = vmatprep.subr.mxu0 %v365
    %441 = vmatpush1.msra.mxu0 %v364
    %442 = vmatprep.subr.mxu0 %v367
    %443 = vmatpush1.msra.mxu0 %v366
    %444 = vmatprep.subr.mxu0 %v369
    %445 = vmatpush1.msra.mxu0 %v368
    %446 = vmatprep.subr.mxu0 %v371
    %447 = vmatpush1.msra.mxu0 %v370
    %448 = vmatprep.subr.mxu0 %v373
    %449 = vmatpush1.msra.mxu0 %v372
    %450 = vmatprep.subr.mxu0 %v375
    %451 = vmatpush1.msra.mxu0 %v374
    %452 = vmatprep.subr.mxu0 %v377
    %453 = vmatpush1.msra.mxu0 %v376
    %454 = vmatprep.subr.mxu0 %v379
    %455 = vmatpush1.msra.mxu0 %v378
    %456 = vmatprep.subr.mxu0 %v381
    %457 = vmatpush1.msra.mxu0 %v380
    %458 = vmatprep.subr.mxu0 %v383
    %459 = vmatpush1.msra.mxu0 %v382
    %460 = vmatprep.mubr.f32.mxu0 %v319
    %461 = vmatmul.mubr.f32.gmra.mrb[0].mxu0 %v318
    %v462 = vpop.f32.mrb[0].mxu0
    %v463 = vadd.f32 %v389, %v462
    %v464 = vpop.f32.mrb[0].mxu0
    %v465 = vadd.f32 %v393, %v464
    %466 = vdwg.mxu0
    %v467 = vlaneseq
    %v468 = vshrl.u32 %v467, 7
    %v469 = vadd.s32 %v468, 8
    %s470 = sld [smem:[#allocation4]]
    %s471 = scalar_lea.vmem [#allocation13], %s470
    %v472 = vld [vmem:[%s471] sm:$0x1]
    %s473 = sld [smem:[#allocation4 + $0x1]]
    %s474 = scalar_lea.vmem [#allocation13], %s473
    %v475 = vld [vmem:[%s474] sm:$0x1]
    %s476 = sld [smem:[#allocation4 + $0x2]]
    %s477 = scalar_lea.vmem [#allocation13], %s476
    %v478 = vld [vmem:[%s477] sm:$0x1]
    %s479 = sld [smem:[#allocation4 + $0x3]]
    %s480 = scalar_lea.vmem [#allocation13], %s479
    %v481 = vld [vmem:[%s480] sm:$0x1]
    %s482 = sld [smem:[#allocation4 + $0x4]]
    %s483 = scalar_lea.vmem [#allocation13], %s482
    %v484 = vld [vmem:[%s483] sm:$0x1]
    %s485 = sld [smem:[#allocation4 + $0x5]]
    %s486 = scalar_lea.vmem [#allocation13], %s485
    %v487 = vld [vmem:[%s486] sm:$0x1]
    %s488 = sld [smem:[#allocation4 + $0x6]]
    %s489 = scalar_lea.vmem [#allocation13], %s488
    %v490 = vld [vmem:[%s489] sm:$0x1]
    %s491 = sld [smem:[#allocation4 + $0x7]]
    %s492 = scalar_lea.vmem [#allocation13], %s491
    %v493 = vld [vmem:[%s492] sm:$0x1]
    %s494 = sld [smem:[#allocation4 + $0x8]]
    %s495 = scalar_lea.vmem [#allocation13], %s494
    %v496 = vld [vmem:[%s495] sm:$0x1]
    %s497 = sld [smem:[#allocation4 + $0x9]]
    %s498 = scalar_lea.vmem [#allocation13], %s497
    %v499 = vld [vmem:[%s498] sm:$0x1]
    %s500 = sld [smem:[#allocation4 + $0xa]]
    %s501 = scalar_lea.vmem [#allocation13], %s500
    %v502 = vld [vmem:[%s501] sm:$0x1]
    %s503 = sld [smem:[#allocation4 + $0xb]]
    %s504 = scalar_lea.vmem [#allocation13], %s503
    %v505 = vld [vmem:[%s504] sm:$0x1]
    %s506 = sld [smem:[#allocation4 + $0xc]]
    %s507 = scalar_lea.vmem [#allocation13], %s506
    %v508 = vld [vmem:[%s507] sm:$0x1]
    %s509 = sld [smem:[#allocation4 + $0xd]]
    %s510 = scalar_lea.vmem [#allocation13], %s509
    %v511 = vld [vmem:[%s510] sm:$0x1]
    %s512 = sld [smem:[#allocation4 + $0xe]]
    %s513 = scalar_lea.vmem [#allocation13], %s512
    %v514 = vld [vmem:[%s513] sm:$0x1]
    %s515 = sld [smem:[#allocation4 + $0xf]]
    %s516 = scalar_lea.vmem [#allocation13], %s515
    %v517 = vld [vmem:[%s516] sm:$0x1]
    %v519 = vrot.slane %v475, 7
    %v522 = vrot.slane %v478, 6
    %v525 = vrot.slane %v481, 5
    %v528 = vrot.slane %v484, 4
    %v531 = vrot.slane %v487, 3
    %v534 = vrot.slane %v490, 2
    %v537 = vrot.slane %v493, 1
    %v540 = vrot.slane %v499, 7
    %v543 = vrot.slane %v502, 6
    %v546 = vrot.slane %v505, 5
    %v549 = vrot.slane %v508, 4
    %v552 = vrot.slane %v511, 3
    %v555 = vrot.slane %v514, 2
    %v558 = vrot.slane %v517, 1
    %vm560 = vcmask 1040384
    %v561 = vsel %vm560, %v472, %v519
    %vm562 = vcmask 1041408
    %v563 = vsel %vm562, %v561, %v522
    %vm564 = vcmask 1042432
    %v565 = vsel %vm564, %v563, %v525
    %vm566 = vcmask 1043456
    %v567 = vsel %vm566, %v565, %v528
    %vm568 = vcmask 1044480
    %v569 = vsel %vm568, %v567, %v531
    %vm570 = vcmask 1045504
    %v571 = vsel %vm570, %v569, %v534
    %vm572 = vcmask 1046528
    %v573 = vsel %vm572, %v571, %v537
    %v574 = vsel %vm560, %v496, %v540
    %v575 = vsel %vm562, %v574, %v543
    %v576 = vsel %vm564, %v575, %v546
    %v577 = vsel %vm566, %v576, %v549
    %v578 = vsel %vm568, %v577, %v552
    %v579 = vsel %vm570, %v578, %v555
    %v580 = vsel %vm572, %v579, %v558
    %s581 = sld [smem:[#allocation3]]
    %v582 = vstv %s581
    %vm583 = vcmp.eq.s32.totalorder %v468, %v582
    %vm584 = vcmp.eq.s32.totalorder %v469, %v582
    %v585 = vsel %vm583, 1, 0
    %v586 = vsel %vm584, 1, 0
    %vm587 = vcmp.eq.s32.totalorder %v585, 1
    %vm588 = vcmp.eq.s32.totalorder %v586, 1
    %v589 = vlaneseq
    %v590 = vshrl.u32 %v589, 7
    %v591 = vsub.s32 0, %v590
    %v592 = vrot.slane %v463, %v591
    %v593 = vsel %vm587, %v592, %v573
    %v594 = vsel %vm588, %v592, %v580
    %s595 = sadd.s32 %s581, 1
    %v596 = vstv %s595
    %vm597 = vcmp.eq.s32.totalorder %v468, %v596
    %vm598 = vcmp.eq.s32.totalorder %v469, %v596
    %v599 = vsel %vm597, 1, 0
    %v600 = vsel %vm598, 1, 0
    %vm601 = vcmp.eq.s32.totalorder %v599, 1
    %vm602 = vcmp.eq.s32.totalorder %v600, 1
    %v603 = vlaneseq
    %v604 = vshrl.u32 %v603, 7
    %v605 = vsub.s32 0, %v604
    %v606 = vrot.slane %v465, %v605
    %v607 = vsel %vm601, %v606, %v593
    %v608 = vsel %vm602, %v606, %v594
    %609 = vst [vmem:[#allocation14] sm:$0xff] %v607
    %610 = vst [vmem:[#allocation14 + $0x8] sm:$0xff] %v608
    %s611 = sld [smem:[#allocation4 + $0x80]]
    %s612 = scalar_lea.vmem [#allocation13], %s611
    %v613 = vld [vmem:[%s612] sm:$0x1]
    %s614 = sld [smem:[#allocation4 + $0x81]]
    %s615 = scalar_lea.vmem [#allocation13], %s614
    %v616 = vld [vmem:[%s615] sm:$0x1]
    %s617 = sld [smem:[#allocation4 + $0x82]]
    %s618 = scalar_lea.vmem [#allocation13], %s617
    %v619 = vld [vmem:[%s618] sm:$0x1]
    %s620 = sld [smem:[#allocation4 + $0x83]]
    %s621 = scalar_lea.vmem [#allocation13], %s620
    %v622 = vld [vmem:[%s621] sm:$0x1]
    %s623 = sld [smem:[#allocation4 + $0x84]]
    %s624 = scalar_lea.vmem [#allocation13], %s623
    %v625 = vld [vmem:[%s624] sm:$0x1]
    %s626 = sld [smem:[#allocation4 + $0x85]]
    %s627 = scalar_lea.vmem [#allocation13], %s626
    %v628 = vld [vmem:[%s627] sm:$0x1]
    %s629 = sld [smem:[#allocation4 + $0x86]]
    %s630 = scalar_lea.vmem [#allocation13], %s629
    %v631 = vld [vmem:[%s630] sm:$0x1]
    %s632 = sld [smem:[#allocation4 + $0x87]]
    %s633 = scalar_lea.vmem [#allocation13], %s632
    %v634 = vld [vmem:[%s633] sm:$0x1]
    %s635 = sld [smem:[#allocation4 + $0x88]]
    %s636 = scalar_lea.vmem [#allocation13], %s635
    %v637 = vld [vmem:[%s636] sm:$0x1]
    %s638 = sld [smem:[#allocation4 + $0x89]]
    %s639 = scalar_lea.vmem [#allocation13], %s638
    %v640 = vld [vmem:[%s639] sm:$0x1]
    %s641 = sld [smem:[#allocation4 + $0x8a]]
    %s642 = scalar_lea.vmem [#allocation13], %s641
    %v643 = vld [vmem:[%s642] sm:$0x1]
    %s644 = sld [smem:[#allocation4 + $0x8b]]
    %s645 = scalar_lea.vmem [#allocation13], %s644
    %v646 = vld [vmem:[%s645] sm:$0x1]
    %s647 = sld [smem:[#allocation4 + $0x8c]]
    %s648 = scalar_lea.vmem [#allocation13], %s647
    %v649 = vld [vmem:[%s648] sm:$0x1]
    %s650 = sld [smem:[#allocation4 + $0x8d]]
    %s651 = scalar_lea.vmem [#allocation13], %s650
    %v652 = vld [vmem:[%s651] sm:$0x1]
    %s653 = sld [smem:[#allocation4 + $0x8e]]
    %s654 = scalar_lea.vmem [#allocation13], %s653
    %v655 = vld [vmem:[%s654] sm:$0x1]
    %s656 = sld [smem:[#allocation4 + $0x8f]]
    %s657 = scalar_lea.vmem [#allocation13], %s656
    %v658 = vld [vmem:[%s657] sm:$0x1]
    %v660 = vrot.slane %v616, 7
    %v663 = vrot.slane %v619, 6
    %v666 = vrot.slane %v622, 5
    %v669 = vrot.slane %v625, 4
    %v672 = vrot.slane %v628, 3
    %v675 = vrot.slane %v631, 2
    %v678 = vrot.slane %v634, 1
    %v681 = vrot.slane %v640, 7
    %v684 = vrot.slane %v643, 6
    %v687 = vrot.slane %v646, 5
    %v690 = vrot.slane %v649, 4
    %v693 = vrot.slane %v652, 3
    %v696 = vrot.slane %v655, 2
    %v699 = vrot.slane %v658, 1
    %v701 = vsel %vm560, %v613, %v660
    %v702 = vsel %vm562, %v701, %v663
    %v703 = vsel %vm564, %v702, %v666
    %v704 = vsel %vm566, %v703, %v669
    %v705 = vsel %vm568, %v704, %v672
    %v706 = vsel %vm570, %v705, %v675
    %v707 = vsel %vm572, %v706, %v678
    %v708 = vsel %vm560, %v637, %v681
    %v709 = vsel %vm562, %v708, %v684
    %v710 = vsel %vm564, %v709, %v687
    %v711 = vsel %vm566, %v710, %v690
    %v712 = vsel %vm568, %v711, %v693
    %v713 = vsel %vm570, %v712, %v696
    %v714 = vsel %vm572, %v713, %v699
    %s715 = sld [smem:[#allocation3 + $0x1]]
    %v716 = vstv %s715
    %vm717 = vcmp.eq.s32.totalorder %v468, %v716
    %vm718 = vcmp.eq.s32.totalorder %v469, %v716
    %v719 = vsel %vm717, 1, 0
    %v720 = vsel %vm718, 1, 0
    %vm721 = vcmp.eq.s32.totalorder %v719, 1
    %vm722 = vcmp.eq.s32.totalorder %v720, 1
    %v723 = vlaneseq
    %v724 = vshrl.u32 %v723, 7
    %v725 = vsub.s32 1, %v724
    %v726 = vrot.slane %v463, %v725
    %v727 = vsel %vm721, %v726, %v707
    %v728 = vsel %vm722, %v726, %v714
    %s729 = sadd.s32 %s715, 1
    %v730 = vstv %s729
    %vm731 = vcmp.eq.s32.totalorder %v468, %v730
    %vm732 = vcmp.eq.s32.totalorder %v469, %v730
    %v733 = vsel %vm731, 1, 0
    %v734 = vsel %vm732, 1, 0
    %vm735 = vcmp.eq.s32.totalorder %v733, 1
    %vm736 = vcmp.eq.s32.totalorder %v734, 1
    %v737 = vlaneseq
    %v738 = vshrl.u32 %v737, 7
    %v739 = vsub.s32 1, %v738
    %v740 = vrot.slane %v465, %v739
    %v741 = vsel %vm735, %v740, %v727
    %v742 = vsel %vm736, %v740, %v728
    %s743 = scalar_lea.vmem [#allocation14], 16
    %744 = vst [vmem:[%s743] sm:$0xff] %v741
    %745 = vst [vmem:[%s743 + $0x8] sm:$0xff] %v742
    // Predicated region
    $region54: #{vqamed_forward.1} parent=1 // pred_check
      _
    $region55: #{vqamed_forward.1} parent=1 // pred_check_branch
      %747 = sbr.rel (0) target = $region57
    $region56: #{vqamed_forward.1} parent=1 // pred_region
      %s749 = ssub.s32 512, 512
      %750 = vsyncadd [#allocation7], %s749
      %s751 = sshll.u32 [#allocation14], 4
      %s752 = int_to_ptr.vmem [resolvable:$true] %s751
      %757 = dma.vmem_to_hbm [thread:$0]  %s752, 512, %s10, [#allocation7], 128, 128, 8
    $region57: #{vqamed_forward.1} parent=1 // pred_fallthru
      _
    // Predicated region
    $region58: #{vqamed_forward.1} parent=1 // pred_check
      _
    $region59: #{vqamed_forward.1} parent=1 // pred_check_branch
      %759 = sbr.rel (0) target = $region61
    $region60: #{vqamed_forward.1} parent=1 // pred_region
      %760 = dma.done [#allocation7], 512
    $region61: #{vqamed_forward.1} parent=1 // pred_fallthru
      _
    %761 = vsyncpa [#allocation6], 1
    %762 = vsyncpa [#allocation9], 1
    %763 = vsyncpa [#allocation12], 1
    %764 = vsyncpa [#allocation7], 1

</llo_original>
